<compile_context>
chip_gen: v6e
topology: v6e:2x2x1
jax: 0.10.0
libtpu: 0.0.40
codegen_flags: <defaults>
</compile_context>

<pallas_src>
import jax
import jax.numpy as jnp
from jax.experimental import pallas as pl
from jax.experimental.pallas import tpu as pltpu


def _dma_identity_kernel(x_hbm_ref, o_hbm_ref, copy_sem):
    # One whole-array HBM -> HBM DMA.  No VMEM staging, no vld/vst work,
    # no tiling constraints.
    cp = pltpu.make_async_copy(x_hbm_ref, o_hbm_ref, copy_sem)
    cp.start()
    cp.wait()


def _pallas_identity(x):
    """Materialized identity copy as a single HBM->HBM DMA Pallas kernel."""
    nbytes = int(x.size) * jnp.dtype(x.dtype).itemsize
    return pl.pallas_call(
        _dma_identity_kernel,
        out_shape=jax.ShapeDtypeStruct(x.shape, x.dtype),
        in_specs=[pl.BlockSpec(memory_space=pl.ANY)],
        out_specs=pl.BlockSpec(memory_space=pl.ANY),
        scratch_shapes=[pltpu.SemaphoreType.DMA(())],
        cost_estimate=pl.CostEstimate(
            flops=0, transcendentals=0, bytes_accessed=2 * nbytes
        ),
    )(x)


def dummy_transformer_block(x, *, force_pallas=False):
    """Identity forward pass of DummyTransformerBlock.

    The module's forward is `return x`, so the fastest (and default)
    implementation is no kernel at all.  `force_pallas=True` routes through
    a materialized HBM->HBM DMA copy so the Pallas kernel itself can be
    compiled and tested.
    """
    if not force_pallas:
        return x
    return _pallas_identity(x)


if __name__ == "__main__":
    # DummyTransformerBlock takes cfg in __init__ but defines no parameters,
    # so there is nothing to initialize.
    key = jax.random.PRNGKey(0)
    k_small, k_big = jax.random.split(key)

    # Small, module-consistent shape (batch=2, seq=8, emb=32).  Default path:
    # identity with zero kernel cost.
    x_small = jax.random.normal(k_small, (2, 8, 32), dtype=jnp.float32)
    y_small = dummy_transformer_block(x_small)
    jax.block_until_ready(y_small)
    assert y_small.shape == x_small.shape and y_small.dtype == x_small.dtype
    assert bool(jnp.all(y_small == x_small))

    # Force the Pallas path so the HBM->HBM DMA kernel is compiled and run.
    y_small_k = dummy_transformer_block(x_small, force_pallas=True)
    jax.block_until_ready(y_small_k)
    assert y_small_k.shape == x_small.shape and y_small_k.dtype == x_small.dtype
    assert bool(jnp.all(y_small_k == x_small))

    # Larger activation through the same DMA kernel (no VMEM sizing concerns:
    # the copy never stages through VMEM).
    x_big = jax.random.normal(k_big, (8, 512, 512), dtype=jnp.float32)
    y_big = dummy_transformer_block(x_big, force_pallas=True)
    jax.block_until_ready(y_big)
    assert y_big.shape == x_big.shape and y_big.dtype == x_big.dtype
    assert bool(jnp.all(y_big == x_big))

    print("KERNEL_OK")
</pallas_src>

<mosaic_0001>
module attributes {stable_mosaic.version = 11 : i64} {
  func.func @_dma_identity_kernel(%arg0: memref<2x8x32xf32, #tpu.memory_space<any>>, %arg1: memref<2x8x32xf32, #tpu.memory_space<any>>, %arg2: memref<!tpu.dma_semaphore, #tpu.memory_space<semaphore_mem>>) attributes {dimension_semantics = [], scalar_prefetch = 0 : i64, scratch_operands = 1 : i64, tpu.core_type = #tpu.core_type<tc>} {
    tpu.enqueue_dma source(%arg0 : memref<2x8x32xf32, #tpu.memory_space<any>>) target(%arg1 : memref<2x8x32xf32, #tpu.memory_space<any>>) target_semaphore(%arg2 : memref<!tpu.dma_semaphore, #tpu.memory_space<semaphore_mem>>)
    tpu.wait_dma2 semaphore(%arg2 : memref<!tpu.dma_semaphore, #tpu.memory_space<semaphore_mem>>) src(%arg0 : memref<2x8x32xf32, #tpu.memory_space<any>>) dst(%arg1 : memref<2x8x32xf32, #tpu.memory_space<any>>)
    return
  }
}

</mosaic_0001>

<llo_original>
// kernel: tpu_custom_call.1
$region0: #{tpu_custom_call.1}
  #allocation0 [shape = 'u32[]', space=smem, size = 0x4, offset = 0x4, fixed_abs, tag = 'smem constant byte address 0x4 - core index']
  #allocation1 [shape = 'u32[144,128]{1,0:T(1,128)}', space=vmem, size = 0x12000, scoped, tag = 'internal scratch']
  #allocation2 [shape = 's32[1]{0}', space=sflag, size = 0x4, scoped, tag = 'scratch operand']
  #allocation3 [shape = 's32[]', space=sflag, size = 0x4, offset = 0, fixed_abs, tag = 'sflag constant byte address 0x0 - dummy sync flag']
  #allocation4 [shape = 'u32[0]{0}', space=smem, size = 0, offset = 0, fixed_abs, tag = 'smem constant byte address 0x0 - null']
  %s0 = inlined_call_operand.hbm [shape: f32[2,8,32], index: 0, kind: input, shape index: {}]
  %s1 = inlined_call_operand.hbm [shape: f32[2,8,32], index: 1, kind: output, shape index: {}]
  %s2 = sld [smem:[#allocation0]]
  $region2: #{tpu_custom_call.1} parent=0
    _
  %s4 = ssub.s32 1, %s2
  %s5 = scalar_select 0, %s4, %s2
  %s7 = sshll.u32 1, 14
  %s8 = sxor.u32 4294967295, %s7
  %12 = dma.general %s0, 256, %s1, [#allocation2], 131072, [#allocation4], 0, 0
  %s13 = smul.u32 2, 8
  %s14 = smul.u32 %s13, 1
  %s15 = sshll.u32 %s14, 4
  %16 = dma.done [#allocation2], %s15
  %17 = vsyncmov [#allocation2]
  %s18 = vpop.sfrf %17
  %p19 = scmp.eq.s32.totalorder %s18, 0
  %p20 = pneg %p19
  %22 = shalt.err (%p20)

</llo_original>
